<compile_context>
chip_gen: v7x
topology: tpu7x:2x2x1
jax: 0.10.0
libtpu: 0.0.40
codegen_flags: <defaults>
</compile_context>

<pallas_src>
import functools

import jax
import jax.numpy as jnp
import numpy as np
from jax.experimental import pallas as pl
from jax.experimental.pallas import tpu as pltpu

LANES = 128        # batch laid out 128 samples per lane row (dense vregs)
SUB = 8            # sublane multiple for the row-block (second-to-last) dim
MAX_TILE_R = 1024  # lane rows per grid step (128K samples, ~3 MiB dbl-buffered)


def _round_up(v, m):
    return ((v + m - 1) // m) * m


def _bool1l_kernel(params_ref, x_ref, o_ref, *, activation):
    """Fused VPU tile: activation(relu(x @ WI.T + bI) @ WO.T + bO).

    params_ref : SMEM f32[9] = [w00, w01, w10, w11, b0, b1, v0, v1, c]
    x_ref      : VMEM f32[2, TILE_R, 128]  (feature-major, batch lane-dense)
    o_ref      : VMEM f32[TILE_R, 128]
    """
    x0 = x_ref[0]          # (TILE_R, 128) fully dense vregs
    x1 = x_ref[1]
    # Hidden layer (PyTorch Linear: h_j = sum_i x_i * W[j, i] + b_j), then ReLU.
    h0 = jnp.maximum(x0 * params_ref[0] + x1 * params_ref[1] + params_ref[4], 0.0)
    h1 = jnp.maximum(x0 * params_ref[2] + x1 * params_ref[3] + params_ref[5], 0.0)
    # Output layer + activation (EUP handles the transcendental).
    y = h0 * params_ref[6] + h1 * params_ref[7] + params_ref[8]
    o_ref[...] = activation(y)


def bool1l_forward(x, wi, bi, wo, bo, activation=jax.nn.sigmoid):
    """x: (N, 2) f32. wi: (2, 2) (out, in). bi: (2,). wo: (1, 2). bo: (1,).

    `activation` is a trace-time callable (like the PyTorch forward's argument).
    Returns (N, 1) f32.
    """
    n, f_in = x.shape
    assert f_in == 2 and wi.shape == (2, 2) and wo.shape == (1, 2)

    # Lane-dense relayout (layout plumbing in the wrapper, one fused XLA copy):
    #   (N, 2) --pad rows--> (Np, 2) --T--> (2, Np) --reshape--> (2, Rp, 128)
    r = pl.cdiv(n, LANES)
    tile_r = min(MAX_TILE_R, _round_up(r, SUB))
    rp = _round_up(r, tile_r)
    n_pad = rp * LANES

    xp = x.astype(jnp.float32)
    if n_pad != n:
        xp = jnp.pad(xp, ((0, n_pad - n), (0, 0)))
    xt = xp.T.reshape(2, rp, LANES)

    # 9 scalars, flattened PyTorch-(out,in)-row-major, delivered via SMEM.
    params = jnp.concatenate(
        [wi.reshape(-1), bi.reshape(-1), wo.reshape(-1), bo.reshape(-1)]
    ).astype(jnp.float32)

    kernel = functools.partial(_bool1l_kernel, activation=activation)

    out = pl.pallas_call(
        kernel,
        out_shape=jax.ShapeDtypeStruct((rp, LANES), jnp.float32),
        grid=(rp // tile_r,),
        in_specs=[
            pl.BlockSpec(memory_space=pltpu.MemorySpace.SMEM),       # 9 scalars
            pl.BlockSpec((2, tile_r, LANES), lambda i: (0, i, 0)),   # batch slab
        ],
        out_specs=pl.BlockSpec((tile_r, LANES), lambda i: (i, 0)),
        compiler_params=pltpu.CompilerParams(
            dimension_semantics=("parallel",),        # megacore split on v7x
            vmem_limit_bytes=32 * 1024 * 1024,        # headroom over v5e default
        ),
    )(params, xt)

    # (Rp, 128) is row-major == flat batch order -> free reshape back to (N, 1).
    return out.reshape(n_pad, 1)[:n]


if __name__ == "__main__":
    key = jax.random.PRNGKey(0)
    k1, k2, k3, k4, k5 = jax.random.split(key, 5)

    # Deterministic parameters (shapes from Bool1L.__init__: Linear(2,2), Linear(2,1)).
    wi = jax.random.normal(k1, (2, 2), jnp.float32)
    bi = jax.random.normal(k2, (2,), jnp.float32)
    wo = jax.random.normal(k3, (1, 2), jnp.float32)
    bo = jax.random.normal(k4, (1,), jnp.float32)

    def ref_forward(x):
        return jax.nn.sigmoid(jnp.maximum(x @ wi.T + bi, 0.0) @ wo.T + bo)

    # Small boolean-style input batch (N=8, features=2), as the forward implies.
    x_small = jnp.array(
        [[0., 0.], [0., 1.], [1., 0.], [1., 1.],
         [0., 0.], [1., 1.], [0., 1.], [1., 0.]],
        dtype=jnp.float32,
    )
    y_small = bool1l_forward(x_small, wi, bi, wo, bo, activation=jax.nn.sigmoid)
    jax.block_until_ready(y_small)
    np.testing.assert_allclose(
        np.asarray(y_small), np.asarray(ref_forward(x_small)), atol=1e-5, rtol=1e-5
    )

    # Larger batch: exercises multi-tile grid, row padding, and megacore split.
    x_big = jax.random.bernoulli(k5, 0.5, (300000, 2)).astype(jnp.float32)
    y_big = bool1l_forward(x_big, wi, bi, wo, bo, activation=jax.nn.sigmoid)
    jax.block_until_ready(y_big)
    np.testing.assert_allclose(
        np.asarray(y_big), np.asarray(ref_forward(x_big)), atol=1e-5, rtol=1e-5
    )

    print("KERNEL_OK")
</pallas_src>

<mosaic_0001>
module attributes {stable_mosaic.version = 11 : i64} {
  func.func @_bool1l_kernel(%arg0: i32, %arg1: memref<9xf32, #tpu.memory_space<smem>>, %arg2: memref<2x8x128xf32, #tpu.memory_space<vmem>>, %arg3: memref<8x128xf32, #tpu.memory_space<vmem>>) attributes {dimension_semantics = [#tpu.dimension_semantics<parallel>], iteration_bounds = array<i64: 1>, scalar_prefetch = 0 : i64, scratch_operands = 0 : i64, tpu.core_type = #tpu.core_type<tc>, window_params = [{transform_indices = @transform_0, window_bounds = array<i64: 9>}, {transform_indices = @transform_1, window_bounds = array<i64: 2, 8, 128>}, {transform_indices = @transform_2, window_bounds = array<i64: 8, 128>}]} {
    %c0 = arith.constant 0 : index
    %c0_0 = arith.constant 0 : index
    %c0_1 = arith.constant 0 : index
    %0 = vector.load %arg2[%c0, %c0_0, %c0_1] : memref<2x8x128xf32, #tpu.memory_space<vmem>>, vector<1x8x128xf32>
    %1 = vector.shape_cast %0 : vector<1x8x128xf32> to vector<8x128xf32>
    %c1 = arith.constant 1 : index
    %c0_2 = arith.constant 0 : index
    %c0_3 = arith.constant 0 : index
    %2 = vector.load %arg2[%c1, %c0_2, %c0_3] : memref<2x8x128xf32, #tpu.memory_space<vmem>>, vector<1x8x128xf32>
    %3 = vector.shape_cast %2 : vector<1x8x128xf32> to vector<8x128xf32>
    %c0_4 = arith.constant 0 : index
    %4 = memref.load %arg1[%c0_4] : memref<9xf32, #tpu.memory_space<smem>>
    %5 = vector.broadcast %4 : f32 to vector<8x128xf32>
    %6 = arith.mulf %1, %5 : vector<8x128xf32>
    %c1_5 = arith.constant 1 : index
    %7 = memref.load %arg1[%c1_5] : memref<9xf32, #tpu.memory_space<smem>>
    %8 = vector.broadcast %7 : f32 to vector<8x128xf32>
    %9 = arith.mulf %3, %8 : vector<8x128xf32>
    %10 = arith.addf %6, %9 : vector<8x128xf32>
    %c4 = arith.constant 4 : index
    %11 = memref.load %arg1[%c4] : memref<9xf32, #tpu.memory_space<smem>>
    %12 = vector.broadcast %11 : f32 to vector<8x128xf32>
    %13 = arith.addf %10, %12 : vector<8x128xf32>
    %cst = arith.constant 0.000000e+00 : f32
    %14 = vector.broadcast %cst : f32 to vector<8x128xf32>
    %15 = arith.maximumf %13, %14 : vector<8x128xf32>
    %c2 = arith.constant 2 : index
    %16 = memref.load %arg1[%c2] : memref<9xf32, #tpu.memory_space<smem>>
    %17 = vector.broadcast %16 : f32 to vector<8x128xf32>
    %18 = arith.mulf %1, %17 : vector<8x128xf32>
    %c3 = arith.constant 3 : index
    %19 = memref.load %arg1[%c3] : memref<9xf32, #tpu.memory_space<smem>>
    %20 = vector.broadcast %19 : f32 to vector<8x128xf32>
    %21 = arith.mulf %3, %20 : vector<8x128xf32>
    %22 = arith.addf %18, %21 : vector<8x128xf32>
    %c5 = arith.constant 5 : index
    %23 = memref.load %arg1[%c5] : memref<9xf32, #tpu.memory_space<smem>>
    %24 = vector.broadcast %23 : f32 to vector<8x128xf32>
    %25 = arith.addf %22, %24 : vector<8x128xf32>
    %cst_6 = arith.constant 0.000000e+00 : f32
    %26 = vector.broadcast %cst_6 : f32 to vector<8x128xf32>
    %27 = arith.maximumf %25, %26 : vector<8x128xf32>
    %c6 = arith.constant 6 : index
    %28 = memref.load %arg1[%c6] : memref<9xf32, #tpu.memory_space<smem>>
    %29 = vector.broadcast %28 : f32 to vector<8x128xf32>
    %30 = arith.mulf %15, %29 : vector<8x128xf32>
    %c7 = arith.constant 7 : index
    %31 = memref.load %arg1[%c7] : memref<9xf32, #tpu.memory_space<smem>>
    %32 = vector.broadcast %31 : f32 to vector<8x128xf32>
    %33 = arith.mulf %27, %32 : vector<8x128xf32>
    %34 = arith.addf %30, %33 : vector<8x128xf32>
    %c8 = arith.constant 8 : index
    %35 = memref.load %arg1[%c8] : memref<9xf32, #tpu.memory_space<smem>>
    %36 = vector.broadcast %35 : f32 to vector<8x128xf32>
    %37 = arith.addf %34, %36 : vector<8x128xf32>
    %38 = arith.negf %37 : vector<8x128xf32>
    %39 = math.exp %38 : vector<8x128xf32>
    %cst_7 = arith.constant 1.000000e+00 : f32
    %40 = vector.broadcast %cst_7 : f32 to vector<8x128xf32>
    %41 = arith.addf %40, %39 : vector<8x128xf32>
    %42 = arith.divf %40, %41 : vector<8x128xf32>
    %c0_8 = arith.constant 0 : index
    %c0_9 = arith.constant 0 : index
    %43 = vector.load %arg3[%c0_8, %c0_9] : memref<8x128xf32, #tpu.memory_space<vmem>>, vector<8x128xf32>
    tpu.vector_store %arg3[%c0_8, %c0_9], %42 {strides = array<i32>} : memref<8x128xf32, #tpu.memory_space<vmem>>, vector<8x128xf32>,
    return
  }
  func.func @transform_0(%arg0: i32) -> i32 {
    %c0_i32 = arith.constant 0 : i32
    %c0_i32_0 = arith.constant 0 : i32
    return %c0_i32 : i32
  }
  func.func @transform_1(%arg0: i32) -> (i32, i32, i32) {
    %c0_i32 = arith.constant 0 : i32
    %c0_i32_0 = arith.constant 0 : i32
    %c0_i32_1 = arith.constant 0 : i32
    return %c0_i32, %arg0, %c0_i32_0 : i32, i32, i32
  }
  func.func @transform_2(%arg0: i32) -> (i32, i32) {
    %c0_i32 = arith.constant 0 : i32
    %c0_i32_0 = arith.constant 0 : i32
    return %arg0, %c0_i32 : i32, i32
  }
}

</mosaic_0001>

<llo_original>
// kernel: tpu_custom_call.1
$region0: #{tpu_custom_call.1}
  #allocation0 [shape = 'u32[]', space=smem, size = 0x4, offset = 0x4, fixed_abs, tag = 'smem constant byte address 0x4 - core index']
  #allocation1 [shape = 'u32[144,128]{1,0:T(1,128)}', space=vmem, size = 0x12000, scoped, tag = 'internal scratch']
  %s0 = inlined_call_operand.hbm [shape: f32[9], index: 0, kind: input, shape index: {}]
  %s1 = inlined_call_operand.hbm [shape: f32[2,8,128], index: 1, kind: input, shape index: {}]
  %s2 = inlined_call_operand.hbm [shape: f32[8,128], index: 2, kind: output, shape index: {}]
  %s3 = sld [smem:[#allocation0]]
  $region26: #{tpu_custom_call.1} parent=0
    _
  %s5 = ssub.s32 1, %s3
  %s6 = scalar_select 0, %s5, %s3
  $region1: #{tpu_custom_call.1} parent=0
    #allocation2 [shape = 'u8[512]{0}', space=smem, size = 0x200, scoped, tag = 'input window, operand 0, single buffered']
    #allocation3 [shape = 's32[1]{0}', space=sflag, size = 0x4, scoped, tag = 'scoped memory for tpu_custom_call.1']
    #allocation4 [shape = 's32[1]{0}', space=sflag, size = 0x4, scoped, tag = 'scoped memory for tpu_custom_call.1']
    #allocation5 [shape = 's32[1]{0}', space=sflag, size = 0x4, scoped, tag = 'scoped memory for tpu_custom_call.1']
    #allocation6 [shape = 'u8[8192]{0}', space=vmem, size = 0x2000, scoped, tag = 'input window, operand 1, single buffered']
    #allocation7 [shape = 'u8[4096]{0}', space=vmem, size = 0x1000, scoped, tag = 'output window, operand 0, single buffered']
    %7 = vsyncpa [#allocation5], 0
    %8 = vsyncpa [#allocation3], 0
    %9 = vsyncpa [#allocation4], 0
    // Predicated region
    $region2: #{tpu_custom_call.1} parent=1 // pred_check
      _
    $region3: #{tpu_custom_call.1} parent=1 // pred_check_branch
      %11 = sbr.rel (0) target = $region5
    $region4: #{tpu_custom_call.1} parent=1 // pred_region
      %s13 = ssub.s32 16, 16
      %14 = vsyncadd [#allocation5], %s13
      %17 = dma.hbm_to_smem %s0, 16, [#allocation2], [#allocation5]
    $region5: #{tpu_custom_call.1} parent=1 // pred_fallthru
      _
    // Predicated region
    $region6: #{tpu_custom_call.1} parent=1 // pred_check
      _
    $region7: #{tpu_custom_call.1} parent=1 // pred_check_branch
      %19 = sbr.rel (0) target = $region9
    $region8: #{tpu_custom_call.1} parent=1 // pred_region
      %s21 = ssub.s32 256, 256
      %22 = vsyncadd [#allocation3], %s21
      %s23 = sshll.u32 [#allocation6], 4
      %s24 = int_to_ptr.vmem [resolvable:$true] %s23
      %29 = dma.hbm_to_vmem [thread:$0]  %s1, 256, %s24, [#allocation3], 128, 128, 8
    $region9: #{tpu_custom_call.1} parent=1 // pred_fallthru
      _
    // Predicated region
    $region10: #{tpu_custom_call.1} parent=1 // pred_check
      _
    $region11: #{tpu_custom_call.1} parent=1 // pred_check_branch
      %31 = sbr.rel (0) target = $region13
    $region12: #{tpu_custom_call.1} parent=1 // pred_region
      %32 = dma.done [#allocation5], 16
    $region13: #{tpu_custom_call.1} parent=1 // pred_fallthru
      _
    // Predicated region
    $region14: #{tpu_custom_call.1} parent=1 // pred_check
      _
    $region15: #{tpu_custom_call.1} parent=1 // pred_check_branch
      %34 = sbr.rel (0) target = $region17
    $region16: #{tpu_custom_call.1} parent=1 // pred_region
      %35 = dma.done [#allocation3], 256
    $region17: #{tpu_custom_call.1} parent=1 // pred_fallthru
      _
    %36 = sfence
    %v37 = vld [vmem:[#allocation6] sm:$0xff]
    %s38 = scalar_lea.vmem [#allocation6], 8
    %v39 = vld [vmem:[%s38] sm:$0xff]
    %s40 = sld [smem:[#allocation2]]
    %v41 = vstv %s40
    %v42 = vmul.f32 %v37, %v41
    %s43 = sld [smem:[#allocation2 + $0x1]]
    %v44 = vstv %s43
    %v45 = vmul.f32 %v39, %v44
    %v46 = vadd.f32 %v42, %v45
    %s47 = sld [smem:[#allocation2 + $0x4]]
    %v48 = vstv %s47
    %v49 = vadd.f32 %v46, %v48
    %v50 = vmax.f32 %v49, 0.0
    %s51 = sld [smem:[#allocation2 + $0x2]]
    %v52 = vstv %s51
    %v53 = vmul.f32 %v37, %v52
    %s54 = sld [smem:[#allocation2 + $0x3]]
    %v55 = vstv %s54
    %v56 = vmul.f32 %v39, %v55
    %v57 = vadd.f32 %v53, %v56
    %s58 = sld [smem:[#allocation2 + $0x5]]
    %v59 = vstv %s58
    %v60 = vadd.f32 %v57, %v59
    %v61 = vmax.f32 %v60, 0.0
    %s62 = sld [smem:[#allocation2 + $0x6]]
    %v63 = vstv %s62
    %v64 = vmul.f32 %v50, %v63
    %s65 = sld [smem:[#allocation2 + $0x7]]
    %v66 = vstv %s65
    %v67 = vmul.f32 %v61, %v66
    %v68 = vadd.f32 %v64, %v67
    %s69 = sld [smem:[#allocation2 + $0x8]]
    %v70 = vstv %s69
    %v71 = vadd.f32 %v68, %v70
    %v72 = vxor.u32 %v71, 2147483648
    %v73 = vmul.f32 %v72, 1.442695
    %v74 = vpow.pop %v73
    %v75 = vadd.f32 %v74, 1.0
    %v76 = vrcp.pop %v75
    %v77 = vmul.f32 1.0, %v76
    %78 = vst [vmem:[#allocation7] sm:$0xff] %v77
    // Predicated region
    $region18: #{tpu_custom_call.1} parent=1 // pred_check
      _
    $region19: #{tpu_custom_call.1} parent=1 // pred_check_branch
      %80 = sbr.rel (0) target = $region21
    $region20: #{tpu_custom_call.1} parent=1 // pred_region
      %s82 = ssub.s32 128, 128
      %83 = vsyncadd [#allocation4], %s82
      %s85 = sshll.u32 [#allocation7], 4
      %s86 = int_to_ptr.vmem [resolvable:$true] %s85
      %88 = dma.vmem_to_hbm [thread:$0]  %s86, 128, %s2, [#allocation4]
    $region21: #{tpu_custom_call.1} parent=1 // pred_fallthru
      _
    // Predicated region
    $region22: #{tpu_custom_call.1} parent=1 // pred_check
      _
    $region23: #{tpu_custom_call.1} parent=1 // pred_check_branch
      %90 = sbr.rel (0) target = $region25
    $region24: #{tpu_custom_call.1} parent=1 // pred_region
      %91 = dma.done [#allocation4], 128
    $region25: #{tpu_custom_call.1} parent=1 // pred_fallthru
      _
    %92 = vsyncpa [#allocation3], 1
    %93 = vsyncpa [#allocation4], 1
    %94 = vsyncpa [#allocation5], 1

</llo_original>
